<compile_context>
chip_gen: v7x
topology: tpu7x:2x2x1
jax: 0.10.0
libtpu: 0.0.40
codegen_flags: <defaults>
</compile_context>

<pallas_src>
import math

import jax
import jax.numpy as jnp
from jax.experimental import pallas as pl
from jax.experimental.pallas import tpu as pltpu


_LANE_CANDIDATES = (1024, 512, 256, 128)   # lane-dense last dims (multiples of 128)
_TARGET_BLOCK_BYTES = 4 << 20              # ~4 MiB per array per grid step
_MIN_BLOCK_BYTES = 128 << 10               # don't shrink blocks below this to add steps
_VMEM_LIMIT_BYTES = 48 << 20               # 3 arrays x 2 bufs x 4 MiB = 24 MiB resident


def _laplace_loss_kernel(pred_ref, target_ref, out_ref):
    # Elementwise hot path: |1 - pred/target|.  HBM-bandwidth bound; the
    # divide/abs are free VPU/EUP filler, so no compute micro-opts needed.
    out_ref[...] = jnp.abs(1.0 - pred_ref[...] / target_ref[...])


def _laplace_loss_kernel_approx(pred_ref, target_ref, out_ref):
    # EUP approx reciprocal drops the VPU Newton-refinement steps of a true
    # divide.  Only worth enabling (approx_div=True) for narrow dtypes if
    # profiling ever shows the VALU slot exposed; irrelevant for f32.
    inv_t = pl.reciprocal(target_ref[...], approx=True)
    out_ref[...] = jnp.abs(1.0 - pred_ref[...] * inv_t)


def _pick_row_tile(rows, itemsize, lane):
    """Sublane-aligned row tile: ~4 MiB blocks, prefer >=8 (else >=2) grid steps."""
    sublane = max(8, 32 // itemsize)              # 8 (f32), 16 (bf16), 32 (i8/fp8)
    if rows <= sublane:
        return rows                               # single block == full rows extent
    bytes_per_row = lane * itemsize
    max_tile = (rows // sublane) * sublane        # never exceed the row count
    tile = min(max_tile,
               max(sublane,
                   (_TARGET_BLOCK_BYTES // bytes_per_row) // sublane * sublane))
    # Prefer >= 8 grid steps (pipelining), else >= 2 steps (both v7x TensorCores
    # stream HBM), but only while blocks stay >= _MIN_BLOCK_BYTES.
    for want_steps in (8, 2):
        cand = (rows // want_steps) // sublane * sublane
        if cand >= sublane and cand * bytes_per_row >= _MIN_BLOCK_BYTES:
            tile = min(tile, cand)
            break
    return tile


def laplace_loss(pred, target, *, donate_pred=False, approx_div=False):
    """Elementwise |1 - pred/target| (matches PyTorch Laplace_Loss, reduction='none')."""
    assert pred.shape == target.shape, "pred/target must have identical shapes"

    # PyTorch-style type promotion (e.g. bf16 / f32 -> compute & return f32).
    out_dtype = jnp.promote_types(pred.dtype, target.dtype)
    pred = pred.astype(out_dtype)
    target = target.astype(out_dtype)

    orig_shape = pred.shape
    itemsize = jnp.dtype(out_dtype).itemsize
    total = math.prod(orig_shape)
    if total == 0:
        return jnp.zeros(orig_shape, out_dtype)

    # Lane width: largest candidate dividing the element count -> pad == 0 on
    # the common path (no extra HBM copies for pad/slice).
    lane = next((l for l in _LANE_CANDIDATES if total % l == 0), None)
    pad = 0
    if lane is None:
        # Rare fallback: element count not 128-aligned.  Pad the inputs to a
        # multiple of 128 and slice the output (costs extra HBM traffic).
        lane = _LANE_CANDIDATES[-1]
        pad = (-total) % lane

    pred_flat = pred.reshape(-1)
    target_flat = target.reshape(-1)
    if pad:
        # Pad target with ones so padded lanes stay finite; sliced off below.
        pred_flat = jnp.pad(pred_flat, (0, pad))
        target_flat = jnp.pad(target_flat, (0, pad), constant_values=1)

    rows = (total + pad) // lane
    row_tile = _pick_row_tile(rows, itemsize, lane)
    grid = (pl.cdiv(rows, row_tile),)   # last block may be ragged; stores masked

    pred2d = pred_flat.reshape(rows, lane)
    target2d = target_flat.reshape(rows, lane)

    kernel = _laplace_loss_kernel_approx if approx_div else _laplace_loss_kernel

    out2d = pl.pallas_call(
        kernel,
        out_shape=jax.ShapeDtypeStruct((rows, lane), out_dtype),
        grid_spec=pltpu.PrefetchScalarGridSpec(
            num_scalar_prefetch=0,
            grid=grid,
            in_specs=[
                pl.BlockSpec((row_tile, lane), lambda i: (i, 0)),
                pl.BlockSpec((row_tile, lane), lambda i: (i, 0)),
            ],
            out_specs=pl.BlockSpec((row_tile, lane), lambda i: (i, 0)),
        ),
        compiler_params=pltpu.CompilerParams(
            # TODO(synk): pltpu.CORE_PARALLEL could shard this axis across
            # v7x's two TensorCores more explicitly; kept as "parallel" for
            # portability across v5e/v6e.
            dimension_semantics=("parallel",),
            vmem_limit_bytes=_VMEM_LIMIT_BYTES,
        ),
        cost_estimate=pl.CostEstimate(
            flops=2 * total,                      # subtract + abs
            transcendentals=total,                # divide -> EUP reciprocal
            bytes_accessed=3 * total * itemsize,  # 2 reads + 1 write
        ),
        # Callers that can donate `pred` reuse its HBM buffer for the output
        # (same elementwise index map, so aliasing is safe).
        input_output_aliases={0: 0} if donate_pred else {},
    )(pred2d, target2d)

    out = out2d.reshape(-1)
    if pad:
        out = out[:total]
    return out.reshape(orig_shape)


if __name__ == "__main__":
    key = jax.random.PRNGKey(0)
    k1, k2, k3, k4 = jax.random.split(key, 4)

    # Small NCHW inputs consistent with the module's usage.
    shape = (2, 4, 16, 16)
    pred = jax.random.normal(k1, shape, dtype=jnp.float32)
    # Keep target away from zero in the example (zeros would give inf/nan,
    # same as the PyTorch module).
    target = jax.random.normal(k2, shape, dtype=jnp.float32)
    target = jnp.where(jnp.abs(target) < 0.1, 0.1, target)

    out = laplace_loss(pred, target)
    jax.block_until_ready(out)
    ref = jnp.abs(1.0 - pred / target)
    assert out.shape == shape
    assert out.dtype == pred.dtype
    assert jnp.allclose(out, ref, rtol=1e-6, atol=1e-6)

    # Also exercise the ragged-last-block path (rows not a multiple of the row
    # tile): masked stores + harmless OOB reads in the final grid step.
    shape2 = (3, 4, 32, 32)   # 12288 elems -> lane=1024, rows=12, tile=8, grid=2
    pred2 = jax.random.normal(k3, shape2, dtype=jnp.float32)
    target2 = jax.random.normal(k4, shape2, dtype=jnp.float32)
    target2 = jnp.where(jnp.abs(target2) < 0.1, 0.1, target2)
    out2 = laplace_loss(pred2, target2)
    jax.block_until_ready(out2)
    ref2 = jnp.abs(1.0 - pred2 / target2)
    assert jnp.allclose(out2, ref2, rtol=1e-6, atol=1e-6)

    print("KERNEL_OK")
</pallas_src>

<mosaic_0001>
module attributes {stable_mosaic.version = 11 : i64} {
  func.func @_laplace_loss_kernel(%arg0: i32, %arg1: memref<2x1024xf32, #tpu.memory_space<vmem>>, %arg2: memref<2x1024xf32, #tpu.memory_space<vmem>>, %arg3: memref<2x1024xf32, #tpu.memory_space<vmem>>) attributes {dimension_semantics = [#tpu.dimension_semantics<parallel>], iteration_bounds = array<i64: 1>, scalar_prefetch = 0 : i64, scratch_operands = 0 : i64, tpu.core_type = #tpu.core_type<tc>, window_params = [{transform_indices = @transform_0, window_bounds = array<i64: 2, 1024>}, {transform_indices = @transform_1, window_bounds = array<i64: 2, 1024>}, {transform_indices = @transform_2, window_bounds = array<i64: 2, 1024>}]} {
    %c0 = arith.constant 0 : index
    %c0_0 = arith.constant 0 : index
    %0 = vector.load %arg1[%c0, %c0_0] : memref<2x1024xf32, #tpu.memory_space<vmem>>, vector<2x1024xf32>
    %c0_1 = arith.constant 0 : index
    %c0_2 = arith.constant 0 : index
    %1 = vector.load %arg2[%c0_1, %c0_2] : memref<2x1024xf32, #tpu.memory_space<vmem>>, vector<2x1024xf32>
    %2 = arith.divf %0, %1 : vector<2x1024xf32>
    %cst = arith.constant 1.000000e+00 : f32
    %3 = vector.broadcast %cst : f32 to vector<2x1024xf32>
    %4 = arith.subf %3, %2 : vector<2x1024xf32>
    %5 = math.absf %4 : vector<2x1024xf32>
    %c0_3 = arith.constant 0 : index
    %c0_4 = arith.constant 0 : index
    %6 = vector.load %arg3[%c0_3, %c0_4] : memref<2x1024xf32, #tpu.memory_space<vmem>>, vector<2x1024xf32>
    tpu.vector_store %arg3[%c0_3, %c0_4], %5 {strides = array<i32>} : memref<2x1024xf32, #tpu.memory_space<vmem>>, vector<2x1024xf32>,
    return
  }
  func.func @transform_0(%arg0: i32) -> (i32, i32) {
    %c0_i32 = arith.constant 0 : i32
    %c0_i32_0 = arith.constant 0 : i32
    return %arg0, %c0_i32 : i32, i32
  }
  func.func @transform_1(%arg0: i32) -> (i32, i32) {
    %c0_i32 = arith.constant 0 : i32
    %c0_i32_0 = arith.constant 0 : i32
    return %arg0, %c0_i32 : i32, i32
  }
  func.func @transform_2(%arg0: i32) -> (i32, i32) {
    %c0_i32 = arith.constant 0 : i32
    %c0_i32_0 = arith.constant 0 : i32
    return %arg0, %c0_i32 : i32, i32
  }
}

</mosaic_0001>

<llo_original>
// kernel: tpu_custom_call.1
$region0: #{tpu_custom_call.1}
  #allocation0 [shape = 'u32[]', space=smem, size = 0x4, offset = 0x4, fixed_abs, tag = 'smem constant byte address 0x4 - core index']
  #allocation1 [shape = 'u32[144,128]{1,0:T(1,128)}', space=vmem, size = 0x12000, scoped, tag = 'internal scratch']
  %s0 = inlined_call_operand.hbm [shape: f32[2,1024], index: 0, kind: input, shape index: {}]
  %s1 = inlined_call_operand.hbm [shape: f32[2,1024], index: 1, kind: input, shape index: {}]
  %s2 = inlined_call_operand.hbm [shape: f32[2,1024], index: 2, kind: output, shape index: {}]
  %s3 = sld [smem:[#allocation0]]
  $region26: #{tpu_custom_call.1} parent=0
    _
  %s5 = ssub.s32 1, %s3
  %s6 = scalar_select 0, %s5, %s3
  $region1: #{tpu_custom_call.1} parent=0
    #allocation2 [shape = 'u8[8192]{0}', space=vmem, size = 0x2000, scoped, tag = 'input window, operand 0, single buffered']
    #allocation3 [shape = 's32[1]{0}', space=sflag, size = 0x4, scoped, tag = 'scoped memory for tpu_custom_call.1']
    #allocation4 [shape = 's32[1]{0}', space=sflag, size = 0x4, scoped, tag = 'scoped memory for tpu_custom_call.1']
    #allocation5 [shape = 'u8[8192]{0}', space=vmem, size = 0x2000, scoped, tag = 'input window, operand 1, single buffered']
    #allocation6 [shape = 's32[1]{0}', space=sflag, size = 0x4, scoped, tag = 'scoped memory for tpu_custom_call.1']
    #allocation7 [shape = 'u8[8192]{0}', space=vmem, size = 0x2000, scoped, tag = 'output window, operand 0, single buffered']
    %7 = vsyncpa [#allocation3], 0
    %8 = vsyncpa [#allocation6], 0
    %9 = vsyncpa [#allocation4], 0
    // Predicated region
    $region2: #{tpu_custom_call.1} parent=1 // pred_check
      _
    $region3: #{tpu_custom_call.1} parent=1 // pred_check_branch
      %11 = sbr.rel (0) target = $region5
    $region4: #{tpu_custom_call.1} parent=1 // pred_region
      %s13 = ssub.s32 256, 256
      %14 = vsyncadd [#allocation3], %s13
      %s16 = sshll.u32 [#allocation2], 4
      %s17 = int_to_ptr.vmem [resolvable:$true] %s16
      %19 = dma.hbm_to_vmem [thread:$0]  %s0, 256, %s17, [#allocation3]
    $region5: #{tpu_custom_call.1} parent=1 // pred_fallthru
      _
    // Predicated region
    $region6: #{tpu_custom_call.1} parent=1 // pred_check
      _
    $region7: #{tpu_custom_call.1} parent=1 // pred_check_branch
      %21 = sbr.rel (0) target = $region9
    $region8: #{tpu_custom_call.1} parent=1 // pred_region
      %s23 = ssub.s32 256, 256
      %24 = vsyncadd [#allocation6], %s23
      %s26 = sshll.u32 [#allocation5], 4
      %s27 = int_to_ptr.vmem [resolvable:$true] %s26
      %29 = dma.hbm_to_vmem [thread:$0]  %s1, 256, %s27, [#allocation6]
    $region9: #{tpu_custom_call.1} parent=1 // pred_fallthru
      _
    // Predicated region
    $region10: #{tpu_custom_call.1} parent=1 // pred_check
      _
    $region11: #{tpu_custom_call.1} parent=1 // pred_check_branch
      %31 = sbr.rel (0) target = $region13
    $region12: #{tpu_custom_call.1} parent=1 // pred_region
      %32 = dma.done [#allocation3], 256
    $region13: #{tpu_custom_call.1} parent=1 // pred_fallthru
      _
    // Predicated region
    $region14: #{tpu_custom_call.1} parent=1 // pred_check
      _
    $region15: #{tpu_custom_call.1} parent=1 // pred_check_branch
      %34 = sbr.rel (0) target = $region17
    $region16: #{tpu_custom_call.1} parent=1 // pred_region
      %35 = dma.done [#allocation6], 256
    $region17: #{tpu_custom_call.1} parent=1 // pred_fallthru
      _
    %v36 = vld [vmem:[#allocation2] sm:$0xff]
    %v37 = vld [vmem:[#allocation2 + $0x8] sm:$0xff]
    %v38 = vld [vmem:[#allocation5] sm:$0xff]
    %v39 = vld [vmem:[#allocation5 + $0x8] sm:$0xff]
    %v40 = vrcp.pop %v38
    %v41 = vmul.f32 %v36, %v40
    %v42 = vrcp.pop %v39
    %v43 = vmul.f32 %v37, %v42
    %v44 = vsub.f32 1.0, %v41
    %v45 = vsub.f32 1.0, %v43
    %v46 = vand.u32 2147483647, %v44
    %v47 = vand.u32 2147483647, %v45
    %48 = vst [vmem:[#allocation7] sm:$0xff] %v46
    %49 = vst [vmem:[#allocation7 + $0x8] sm:$0xff] %v47
    // Predicated region
    $region18: #{tpu_custom_call.1} parent=1 // pred_check
      _
    $region19: #{tpu_custom_call.1} parent=1 // pred_check_branch
      %51 = sbr.rel (0) target = $region21
    $region20: #{tpu_custom_call.1} parent=1 // pred_region
      %s53 = ssub.s32 256, 256
      %54 = vsyncadd [#allocation4], %s53
      %s56 = sshll.u32 [#allocation7], 4
      %s57 = int_to_ptr.vmem [resolvable:$true] %s56
      %59 = dma.vmem_to_hbm [thread:$0]  %s57, 256, %s2, [#allocation4]
    $region21: #{tpu_custom_call.1} parent=1 // pred_fallthru
      _
    // Predicated region
    $region22: #{tpu_custom_call.1} parent=1 // pred_check
      _
    $region23: #{tpu_custom_call.1} parent=1 // pred_check_branch
      %61 = sbr.rel (0) target = $region25
    $region24: #{tpu_custom_call.1} parent=1 // pred_region
      %62 = dma.done [#allocation4], 256
    $region25: #{tpu_custom_call.1} parent=1 // pred_fallthru
      _
    %63 = vsyncpa [#allocation3], 1
    %64 = vsyncpa [#allocation6], 1
    %65 = vsyncpa [#allocation4], 1

</llo_original>
